<compile_context>
chip_gen: v6e
topology: v6e:2x2x1
jax: 0.10.0
libtpu: 0.0.40
codegen_flags: <defaults>
</compile_context>

<pallas_src>
import functools

import jax
import jax.numpy as jnp
from jax.experimental import pallas as pl
from jax.experimental.pallas import tpu as pltpu

_LANE = 128
_MF_TILE_CAP = 8192     # HBM-bound path: ~1 MiB f32 per input tile at E=32.
_MLP_TILE_CAP = 1024    # MXU-bound path: bigger tiles amortize step overhead.

_COMPILER_PARAMS = pltpu.CompilerParams(
    dimension_semantics=("parallel",),          # shard batch tiles across TCs
    vmem_limit_bytes=32 * 1024 * 1024,          # safe on v5e/v6e/v7x
)


def _round_up(x, m):
    return (x + m - 1) // m * m


def _pick_tile_b(batch, cap):
    """Return (tile_b, padded_batch).

    tile_b is a multiple of 128 (lane-dense transposed output), capped at
    `cap`, and chosen so the grid has >= 2 steps whenever the padded batch
    allows it (lets dimension_semantics=("parallel",) use both of v7x's
    TensorCores); padded_batch is a multiple of tile_b.
    """
    b_pad = _round_up(batch, _LANE)
    if b_pad <= _LANE:
        tb = _LANE
    else:
        tb = min(cap, _round_up((b_pad + 1) // 2, _LANE))
    return tb, _round_up(b_pad, tb)


def _pad_batch(x, b_pad):
    b = x.shape[0]
    if b == b_pad:
        return x
    return jnp.pad(x, ((0, b_pad - b), (0, 0)))


# ----------------------------------------------------------------------------
# MF:  rating = sum(user * item, axis=1)
# ----------------------------------------------------------------------------
def _mf_kernel(u_ref, i_ref, o_ref):
    # u_ref, i_ref: (TB, E) f32 ; o_ref: (1, TB) f32 (lane-dense, transposed)
    o_ref[...] = jnp.sum(u_ref[...] * i_ref[...], axis=1)[None, :]


def mf_rating(u_src, i_src):
    B, E = u_src.shape
    tb, b_pad = _pick_tile_b(B, _MF_TILE_CAP)
    u = _pad_batch(u_src, b_pad)
    i = _pad_batch(i_src, b_pad)
    n_tiles = b_pad // tb

    out = pl.pallas_call(
        _mf_kernel,
        out_shape=jax.ShapeDtypeStruct((1, b_pad), jnp.float32),
        grid_spec=pltpu.PrefetchScalarGridSpec(
            num_scalar_prefetch=0,
            grid=(n_tiles,),
            in_specs=[pl.BlockSpec((tb, E), lambda t: (t, 0)),
                      pl.BlockSpec((tb, E), lambda t: (t, 0))],
            out_specs=pl.BlockSpec((1, tb), lambda t: (0, t)),
        ),
        compiler_params=_COMPILER_PARAMS,
    )(u, i)
    return out[0, :B]   # torch.sum(..., 1) -> shape (B,)


# ----------------------------------------------------------------------------
# MLP head:
#   hidden = sigmoid(u @ W1u + i @ W1i + b1)      (== cat(u,i) @ W1 + b1)
#   for layer in layers: hidden = sigmoid(hidden @ Wl + bl)
#   rating = squeeze(hidden @ Wlast + blast)
# ----------------------------------------------------------------------------
def _sigmoid(z):
    # Single EUP tanh instead of XLA's logistic (exp + divide + select).
    return 0.5 * jnp.tanh(0.5 * z) + 0.5


def _mlp_kernel(num_layers, u_ref, i_ref, w1u_ref, w1i_ref, b1_ref,
                wl_ref, bl_ref, wlast_ref, blast_ref, o_ref, h_ref):
    # u/i: (TB, E) f32; w1u/w1i: (E, H) bf16; b1: (1, H) f32
    # wl: (L, H, H) bf16; bl: (L, H) f32; wlast: (1, H) f32; blast: (1, 1) f32
    # o: (1, TB) f32 lane-dense; h_ref: (TB, H) bf16 VMEM scratch
    #
    # TODO(synk): the two K=32 matmuls could be merged into one K=64 matmul
    # (cat(W1u,W1i) resident + a (TB,2E) staging scratch); ~3% of total FLOPs,
    # low priority.
    z = (jnp.dot(u_ref[...].astype(jnp.bfloat16), w1u_ref[...],
                 preferred_element_type=jnp.float32)
         + jnp.dot(i_ref[...].astype(jnp.bfloat16), w1i_ref[...],
                   preferred_element_type=jnp.float32)
         + b1_ref[...])
    # Sigmoid math in f32 (portable to v5e: no bf16 VPU/EUP); store bf16 so
    # per-layer scratch traffic halves and the MXU input needs no re-cast.
    h_ref[...] = _sigmoid(z).astype(jnp.bfloat16)
    for l in range(num_layers):                 # static unroll (num_layers=2)
        z = (jnp.dot(h_ref[...], wl_ref[l],
                     preferred_element_type=jnp.float32)
             + bl_ref[pl.ds(l, 1), :])
        h_ref[...] = _sigmoid(z).astype(jnp.bfloat16)
    # Final (H -> 1) projection on the VPU/XLU (an N=1 MXU matmul would waste
    # the systolic array), fused with the transposed lane-dense store.
    r = jnp.sum(h_ref[...].astype(jnp.float32) * wlast_ref[...], axis=1)
    o_ref[...] = r[None, :] + blast_ref[...]


def mlp_rating(u_src, i_src, params):
    B, E = u_src.shape
    tb, b_pad = _pick_tile_b(B, _MLP_TILE_CAP)
    u = _pad_batch(u_src, b_pad)
    i = _pad_batch(i_src, b_pad)
    n_tiles = b_pad // tb
    L, H, _ = params["w_layers"].shape          # H is already lane-padded

    kernel = functools.partial(_mlp_kernel, L)
    out = pl.pallas_call(
        kernel,
        out_shape=jax.ShapeDtypeStruct((1, b_pad), jnp.float32),
        grid_spec=pltpu.PrefetchScalarGridSpec(
            num_scalar_prefetch=0,
            grid=(n_tiles,),
            in_specs=[
                pl.BlockSpec((tb, E), lambda t: (t, 0)),        # u tile
                pl.BlockSpec((tb, E), lambda t: (t, 0)),        # i tile
                # Constant index_maps -> weights stay VMEM-resident across the
                # grid (total ~1.2 MiB bf16; well under the VMEM budget even
                # with default double-buffering).
                pl.BlockSpec((E, H), lambda t: (0, 0)),         # W1u (resident)
                pl.BlockSpec((E, H), lambda t: (0, 0)),         # W1i (resident)
                pl.BlockSpec((1, H), lambda t: (0, 0)),         # b1
                pl.BlockSpec((L, H, H), lambda t: (0, 0, 0)),   # W_layers
                pl.BlockSpec((L, H), lambda t: (0, 0)),         # b_layers
                pl.BlockSpec((1, H), lambda t: (0, 0)),         # w_last (row)
                pl.BlockSpec((1, 1), lambda t: (0, 0)),         # b_last
            ],
            out_specs=pl.BlockSpec((1, tb), lambda t: (0, t)),
            scratch_shapes=[pltpu.VMEM((tb, H), jnp.bfloat16)],  # hidden acts
        ),
        compiler_params=_COMPILER_PARAMS,
    )(u, i, params["w1u"], params["w1i"], params["b1"],
      params["w_layers"], params["b_layers"], params["w_last"],
      params["b_last"])
    return out[0, :B]   # torch.squeeze of (B, 1) -> (B,)


# ----------------------------------------------------------------------------
# Parameter construction (deterministic, mirrors __init__ shapes / init)
# ----------------------------------------------------------------------------
def init_trad_model_params(key, nuser, nitem, emsize, model_name,
                           hidden_size=400, num_layers=2):
    initrange = 0.1
    keys = jax.random.split(key, 8)
    params = {
        "user_emb": jax.random.uniform(keys[0], (nuser, emsize), jnp.float32,
                                       -initrange, initrange),
        "item_emb": jax.random.uniform(keys[1], (nitem, emsize), jnp.float32,
                                       -initrange, initrange),
    }
    if model_name != "mf":
        # TODO(synk): the reference MLP(emsize) declares first_layer with
        # in_features=emsize but its forward feeds cat([user, item]) of width
        # 2*emsize (shape error in PyTorch as written); we use 2*emsize and
        # split W1 into user/item halves so no concat is needed in the kernel.
        H = hidden_size
        Hp = _round_up(H, _LANE)     # pad 400 -> 512 for clean (8,128) tiles

        def pad_cols(w):
            return jnp.pad(w, ((0, 0), (0, Hp - H)))

        w1u = jax.random.uniform(keys[2], (emsize, H), jnp.float32,
                                 -initrange, initrange)
        w1i = jax.random.uniform(keys[3], (emsize, H), jnp.float32,
                                 -initrange, initrange)
        wl = jax.random.uniform(keys[4], (num_layers, H, H), jnp.float32,
                                -initrange, initrange)
        # CORRECTNESS NOTE: padded hidden columns evaluate sigmoid(0)=0.5, so
        # the padded *rows* of w_layers, padded columns of w_last, and padded
        # bias entries MUST stay exactly zero (jnp.pad guarantees this).  Do
        # not change this init to non-zero padding.
        wl = jnp.pad(wl, ((0, 0), (0, Hp - H), (0, Hp - H)))   # zero pad
        wlast = jax.random.uniform(keys[5], (1, H), jnp.float32,
                                   -initrange, initrange)
        params.update({
            # MXU operands stored bf16 (kernel accumulates in f32).
            "w1u": pad_cols(w1u).astype(jnp.bfloat16),
            "w1i": pad_cols(w1i).astype(jnp.bfloat16),
            "b1": jnp.zeros((1, Hp), jnp.float32),
            "w_layers": wl.astype(jnp.bfloat16),
            "b_layers": jnp.zeros((num_layers, Hp), jnp.float32),
            # Final H->1 projection runs on the VPU; keep f32 (v5e has no
            # native bf16 VPU).
            "w_last": pad_cols(wlast),
            "b_last": jnp.zeros((1, 1), jnp.float32),
        })
    return params


def trad_model_forward(params, user, item, model_name):
    # TODO(synk): the nn.Embedding row gather stays in plain JAX glue; fusing
    # it via scalar-prefetch / manual per-row DMA would save one (B,E) HBM
    # round-trip on the HBM-bound MF path, but 128-B per-row DMAs carry heavy
    # fixed overhead at small E — only worth it if profiling shows the extra
    # materialization pass.
    u_src = params["user_emb"][user]   # (B, E)
    i_src = params["item_emb"][item]   # (B, E)
    if model_name == "mf":
        return mf_rating(u_src, i_src)
    return mlp_rating(u_src, i_src, params)


# Pure-JAX reference for sanity checking (f32; uses the same stored params).
def trad_model_ref(params, user, item, model_name):
    u = params["user_emb"][user]
    i = params["item_emb"][item]
    if model_name == "mf":
        return jnp.sum(u * i, axis=1)
    w1u = params["w1u"].astype(jnp.float32)
    w1i = params["w1i"].astype(jnp.float32)
    h = jax.nn.sigmoid(u @ w1u + i @ w1i + params["b1"])
    for l in range(params["w_layers"].shape[0]):
        wl = params["w_layers"][l].astype(jnp.float32)
        h = jax.nn.sigmoid(h @ wl + params["b_layers"][l])
    return (h @ params["w_last"].T + params["b_last"])[:, 0]


if __name__ == "__main__":
    key = jax.random.PRNGKey(0)
    nuser, nitem, emsize, batch = 32, 48, 32, 8

    k_idx_u, k_idx_i, k_params = jax.random.split(key, 3)
    user = jax.random.randint(k_idx_u, (batch,), 0, nuser, dtype=jnp.int32)
    item = jax.random.randint(k_idx_i, (batch,), 0, nitem, dtype=jnp.int32)

    ok = True
    for model_name in ("mf", "mlp"):
        params = init_trad_model_params(k_params, nuser, nitem, emsize,
                                        model_name)
        out = jax.block_until_ready(
            trad_model_forward(params, user, item, model_name))
        ref = trad_model_ref(params, user, item, model_name)
        # MF is pure f32 elementwise (exact); MLP uses bf16 MXU operands and
        # bf16-stored activations with f32 accumulation -> relaxed tolerance.
        tol = 1e-5 if model_name == "mf" else 5e-2
        if out.shape != (batch,) or not jnp.allclose(out, ref, atol=tol,
                                                     rtol=tol):
            ok = False

    if ok:
        print("KERNEL_OK")
</pallas_src>

<mosaic_0001>
module attributes {stable_mosaic.version = 11 : i64} {
  func.func @_mf_kernel(%arg0: i32, %arg1: memref<128x32xf32, #tpu.memory_space<vmem>>, %arg2: memref<128x32xf32, #tpu.memory_space<vmem>>, %arg3: memref<1x128xf32, #tpu.memory_space<vmem>>) attributes {dimension_semantics = [#tpu.dimension_semantics<parallel>], iteration_bounds = array<i64: 1>, scalar_prefetch = 0 : i64, scratch_operands = 0 : i64, tpu.core_type = #tpu.core_type<tc>, window_params = [{transform_indices = @transform_0, window_bounds = array<i64: 128, 32>}, {transform_indices = @transform_1, window_bounds = array<i64: 128, 32>}, {transform_indices = @transform_2, window_bounds = array<i64: 1, 128>}]} {
    %c0 = arith.constant 0 : index
    %c0_0 = arith.constant 0 : index
    %0 = vector.load %arg1[%c0, %c0_0] : memref<128x32xf32, #tpu.memory_space<vmem>>, vector<128x32xf32>
    %c0_1 = arith.constant 0 : index
    %c0_2 = arith.constant 0 : index
    %1 = vector.load %arg2[%c0_1, %c0_2] : memref<128x32xf32, #tpu.memory_space<vmem>>, vector<128x32xf32>
    %2 = arith.mulf %0, %1 : vector<128x32xf32>
    %cst = arith.constant dense<0.000000e+00> : vector<128xf32>
    %3 = vector.multi_reduction <add>, %2, %cst [1] : vector<128x32xf32> to vector<128xf32>
    %4 = vector.shape_cast %3 : vector<128xf32> to vector<1x128xf32>
    %c0_3 = arith.constant 0 : index
    %c0_4 = arith.constant 0 : index
    %5 = vector.load %arg3[%c0_3, %c0_4] : memref<1x128xf32, #tpu.memory_space<vmem>>, vector<1x128xf32>
    tpu.vector_store %arg3[%c0_3, %c0_4], %4 {strides = array<i32>} : memref<1x128xf32, #tpu.memory_space<vmem>>, vector<1x128xf32>,
    return
  }
  func.func @transform_0(%arg0: i32) -> (i32, i32) {
    %c0_i32 = arith.constant 0 : i32
    %c0_i32_0 = arith.constant 0 : i32
    return %arg0, %c0_i32 : i32, i32
  }
  func.func @transform_1(%arg0: i32) -> (i32, i32) {
    %c0_i32 = arith.constant 0 : i32
    %c0_i32_0 = arith.constant 0 : i32
    return %arg0, %c0_i32 : i32, i32
  }
  func.func @transform_2(%arg0: i32) -> (i32, i32) {
    %c0_i32 = arith.constant 0 : i32
    %c0_i32_0 = arith.constant 0 : i32
    return %c0_i32, %arg0 : i32, i32
  }
}

</mosaic_0001>

<llo_original>
// kernel: tpu_custom_call.1
$region0: #{tpu_custom_call.1}
  #allocation0 [shape = 'u32[]', space=smem, size = 0x4, offset = 0x4, fixed_abs, tag = 'smem constant byte address 0x4 - core index']
  #allocation1 [shape = 'u32[144,128]{1,0:T(1,128)}', space=vmem, size = 0x12000, scoped, tag = 'internal scratch']
  %s0 = inlined_call_operand.vmem [shape: f32[128,32], index: 0, kind: input, shape index: {}]
  %s1 = inlined_call_operand.vmem [shape: f32[128,32], index: 1, kind: input, shape index: {}]
  %s2 = inlined_call_operand.hbm [shape: f32[1,128], index: 2, kind: output, shape index: {}]
  %s3 = sld [smem:[#allocation0]]
  $region18: #{tpu_custom_call.1} parent=0
    _
  %s5 = ssub.s32 1, %s3
  %s6 = scalar_select 0, %s5, %s3
  $region1: #{tpu_custom_call.1} parent=0
    #allocation2 [shape = 'u8[512]{0}', space=vmem, size = 0x400, scoped, tag = 'output window, operand 0, single buffered']
    #allocation3 [shape = 's32[1]{0}', space=sflag, size = 0x4, scoped, tag = 'scoped memory for tpu_custom_call.1']
    %7 = vsyncpa [#allocation3], 0
    // Predicated region
    $region2: #{tpu_custom_call.1} parent=1 // pred_check
      _
    $region3: #{tpu_custom_call.1} parent=1 // pred_check_branch
      %9 = sbr.rel (0) target = $region5
    $region4: #{tpu_custom_call.1} parent=1 // pred_region
      _
    $region5: #{tpu_custom_call.1} parent=1 // pred_fallthru
      _
    // Predicated region
    $region6: #{tpu_custom_call.1} parent=1 // pred_check
      _
    $region7: #{tpu_custom_call.1} parent=1 // pred_check_branch
      %11 = sbr.rel (0) target = $region9
    $region8: #{tpu_custom_call.1} parent=1 // pred_region
      _
    $region9: #{tpu_custom_call.1} parent=1 // pred_fallthru
      _
    %v12 = vld [vmem:[%s0] sm:$0xff]
    %v13 = vld [vmem:[%s0 + $0x8] sm:$0xff]
    %v14 = vld [vmem:[%s0 + $0x10] sm:$0xff]
    %v15 = vld [vmem:[%s0 + $0x18] sm:$0xff]
    %v16 = vld [vmem:[%s0 + $0x20] sm:$0xff]
    %v17 = vld [vmem:[%s0 + $0x28] sm:$0xff]
    %v18 = vld [vmem:[%s0 + $0x30] sm:$0xff]
    %v19 = vld [vmem:[%s0 + $0x38] sm:$0xff]
    %v20 = vld [vmem:[%s0 + $0x40] sm:$0xff]
    %v21 = vld [vmem:[%s0 + $0x48] sm:$0xff]
    %v22 = vld [vmem:[%s0 + $0x50] sm:$0xff]
    %v23 = vld [vmem:[%s0 + $0x58] sm:$0xff]
    %v24 = vld [vmem:[%s0 + $0x60] sm:$0xff]
    %v25 = vld [vmem:[%s0 + $0x68] sm:$0xff]
    %v26 = vld [vmem:[%s0 + $0x70] sm:$0xff]
    %v27 = vld [vmem:[%s0 + $0x78] sm:$0xff]
    %v28 = vld [vmem:[%s1] sm:$0xff]
    %v29 = vld [vmem:[%s1 + $0x8] sm:$0xff]
    %v30 = vld [vmem:[%s1 + $0x10] sm:$0xff]
    %v31 = vld [vmem:[%s1 + $0x18] sm:$0xff]
    %v32 = vld [vmem:[%s1 + $0x20] sm:$0xff]
    %v33 = vld [vmem:[%s1 + $0x28] sm:$0xff]
    %v34 = vld [vmem:[%s1 + $0x30] sm:$0xff]
    %v35 = vld [vmem:[%s1 + $0x38] sm:$0xff]
    %v36 = vld [vmem:[%s1 + $0x40] sm:$0xff]
    %v37 = vld [vmem:[%s1 + $0x48] sm:$0xff]
    %v38 = vld [vmem:[%s1 + $0x50] sm:$0xff]
    %v39 = vld [vmem:[%s1 + $0x58] sm:$0xff]
    %v40 = vld [vmem:[%s1 + $0x60] sm:$0xff]
    %v41 = vld [vmem:[%s1 + $0x68] sm:$0xff]
    %v42 = vld [vmem:[%s1 + $0x70] sm:$0xff]
    %v43 = vld [vmem:[%s1 + $0x78] sm:$0xff]
    %v44 = vmul.f32 %v12, %v28
    %v45 = vmul.f32 %v13, %v29
    %v46 = vmul.f32 %v14, %v30
    %v47 = vmul.f32 %v15, %v31
    %v48 = vmul.f32 %v16, %v32
    %v49 = vmul.f32 %v17, %v33
    %v50 = vmul.f32 %v18, %v34
    %v51 = vmul.f32 %v19, %v35
    %v52 = vmul.f32 %v20, %v36
    %v53 = vmul.f32 %v21, %v37
    %v54 = vmul.f32 %v22, %v38
    %v55 = vmul.f32 %v23, %v39
    %v56 = vmul.f32 %v24, %v40
    %v57 = vmul.f32 %v25, %v41
    %v58 = vmul.f32 %v26, %v42
    %v59 = vmul.f32 %v27, %v43
    %vm60 = vcmask 261120
    %v61 = vsel %vm60, %v44, 0.0
    %62 = vadd.xlane.f32.xlu0 %v61
    %v63 = vpop.xlane.xlu0 %62
    %v64 = vsel %vm60, %v45, 0.0
    %65 = vadd.xlane.f32.xlu0 %v64
    %v66 = vpop.xlane.xlu0 %65
    %v67 = vsel %vm60, %v46, 0.0
    %68 = vadd.xlane.f32.xlu0 %v67
    %v69 = vpop.xlane.xlu0 %68
    %v70 = vsel %vm60, %v47, 0.0
    %71 = vadd.xlane.f32.xlu0 %v70
    %v72 = vpop.xlane.xlu0 %71
    %v73 = vsel %vm60, %v48, 0.0
    %74 = vadd.xlane.f32.xlu0 %v73
    %v75 = vpop.xlane.xlu0 %74
    %v76 = vsel %vm60, %v49, 0.0
    %77 = vadd.xlane.f32.xlu0 %v76
    %v78 = vpop.xlane.xlu0 %77
    %v79 = vsel %vm60, %v50, 0.0
    %80 = vadd.xlane.f32.xlu0 %v79
    %v81 = vpop.xlane.xlu0 %80
    %v82 = vsel %vm60, %v51, 0.0
    %83 = vadd.xlane.f32.xlu0 %v82
    %v84 = vpop.xlane.xlu0 %83
    %v85 = vsel %vm60, %v52, 0.0
    %86 = vadd.xlane.f32.xlu0 %v85
    %v87 = vpop.xlane.xlu0 %86
    %v88 = vsel %vm60, %v53, 0.0
    %89 = vadd.xlane.f32.xlu0 %v88
    %v90 = vpop.xlane.xlu0 %89
    %v91 = vsel %vm60, %v54, 0.0
    %92 = vadd.xlane.f32.xlu0 %v91
    %v93 = vpop.xlane.xlu0 %92
    %v94 = vsel %vm60, %v55, 0.0
    %95 = vadd.xlane.f32.xlu0 %v94
    %v96 = vpop.xlane.xlu0 %95
    %v97 = vsel %vm60, %v56, 0.0
    %98 = vadd.xlane.f32.xlu0 %v97
    %v99 = vpop.xlane.xlu0 %98
    %v100 = vsel %vm60, %v57, 0.0
    %101 = vadd.xlane.f32.xlu0 %v100
    %v102 = vpop.xlane.xlu0 %101
    %v103 = vsel %vm60, %v58, 0.0
    %104 = vadd.xlane.f32.xlu0 %v103
    %v105 = vpop.xlane.xlu0 %104
    %v106 = vsel %vm60, %v59, 0.0
    %107 = vadd.xlane.f32.xlu0 %v106
    %v108 = vpop.xlane.xlu0 %107
    %v125 = vlaneseq
    %v126 = vand.u32 %v125, 127
    %v127 = vlaneseq
    %v128 = vshrl.u32 %v127, 7
    %v129 = vsub.s32 %v126, %v128
    %v130 = vrot.slane %v63, %v129
    %v131 = vadd.s32 %v126, 4294967288
    %v132 = vlaneseq
    %v133 = vshrl.u32 %v132, 7
    %v134 = vsub.s32 %v131, %v133
    %v135 = vrot.slane %v66, %v134
    %vm136 = vcmask 130112
    %v137 = vsel %vm136, %v135, %v130
    %v138 = vadd.s32 %v126, 4294967280
    %v139 = vlaneseq
    %v140 = vshrl.u32 %v139, 7
    %v141 = vsub.s32 %v138, %v140
    %v142 = vrot.slane %v69, %v141
    %vm143 = vcmask 195712
    %v144 = vsel %vm143, %v142, %v137
    %v145 = vadd.s32 %v126, 4294967272
    %v146 = vlaneseq
    %v147 = vshrl.u32 %v146, 7
    %v148 = vsub.s32 %v145, %v147
    %v149 = vrot.slane %v72, %v148
    %vm150 = vcmask 261312
    %v151 = vsel %vm150, %v149, %v144
    %v152 = vadd.s32 %v126, 4294967264
    %v153 = vlaneseq
    %v154 = vshrl.u32 %v153, 7
    %v155 = vsub.s32 %v152, %v154
    %v156 = vrot.slane %v75, %v155
    %vm157 = vcmask 326912
    %v158 = vsel %vm157, %v156, %v151
    %v159 = vadd.s32 %v126, 4294967256
    %v160 = vlaneseq
    %v161 = vshrl.u32 %v160, 7
    %v162 = vsub.s32 %v159, %v161
    %v163 = vrot.slane %v78, %v162
    %vm164 = vcmask 392512
    %v165 = vsel %vm164, %v163, %v158
    %v166 = vadd.s32 %v126, 4294967248
    %v167 = vlaneseq
    %v168 = vshrl.u32 %v167, 7
    %v169 = vsub.s32 %v166, %v168
    %v170 = vrot.slane %v81, %v169
    %vm171 = vcmask 458112
    %v172 = vsel %vm171, %v170, %v165
    %v173 = vadd.s32 %v126, 4294967240
    %v174 = vlaneseq
    %v175 = vshrl.u32 %v174, 7
    %v176 = vsub.s32 %v173, %v175
    %v177 = vrot.slane %v84, %v176
    %vm178 = vcmask 523712
    %v179 = vsel %vm178, %v177, %v172
    %v180 = vadd.s32 %v126, 4294967232
    %v181 = vlaneseq
    %v182 = vshrl.u32 %v181, 7
    %v183 = vsub.s32 %v180, %v182
    %v184 = vrot.slane %v87, %v183
    %vm185 = vcmask 589312
    %v186 = vsel %vm185, %v184, %v179
    %v187 = vadd.s32 %v126, 4294967224
    %v188 = vlaneseq
    %v189 = vshrl.u32 %v188, 7
    %v190 = vsub.s32 %v187, %v189
    %v191 = vrot.slane %v90, %v190
    %vm192 = vcmask 654912
    %v193 = vsel %vm192, %v191, %v186
    %v194 = vadd.s32 %v126, 4294967216
    %v195 = vlaneseq
    %v196 = vshrl.u32 %v195, 7
    %v197 = vsub.s32 %v194, %v196
    %v198 = vrot.slane %v93, %v197
    %vm199 = vcmask 720512
    %v200 = vsel %vm199, %v198, %v193
    %v201 = vadd.s32 %v126, 4294967208
    %v202 = vlaneseq
    %v203 = vshrl.u32 %v202, 7
    %v204 = vsub.s32 %v201, %v203
    %v205 = vrot.slane %v96, %v204
    %vm206 = vcmask 786112
    %v207 = vsel %vm206, %v205, %v200
    %v208 = vadd.s32 %v126, 4294967200
    %v209 = vlaneseq
    %v210 = vshrl.u32 %v209, 7
    %v211 = vsub.s32 %v208, %v210
    %v212 = vrot.slane %v99, %v211
    %vm213 = vcmask 851712
    %v214 = vsel %vm213, %v212, %v207
    %v215 = vadd.s32 %v126, 4294967192
    %v216 = vlaneseq
    %v217 = vshrl.u32 %v216, 7
    %v218 = vsub.s32 %v215, %v217
    %v219 = vrot.slane %v102, %v218
    %vm220 = vcmask 917312
    %v221 = vsel %vm220, %v219, %v214
    %v222 = vadd.s32 %v126, 4294967184
    %v223 = vlaneseq
    %v224 = vshrl.u32 %v223, 7
    %v225 = vsub.s32 %v222, %v224
    %v226 = vrot.slane %v105, %v225
    %vm227 = vcmask 982912
    %v228 = vsel %vm227, %v226, %v221
    %v229 = vadd.s32 %v126, 4294967176
    %v230 = vlaneseq
    %v231 = vshrl.u32 %v230, 7
    %v232 = vsub.s32 %v229, %v231
    %v233 = vrot.slane %v108, %v232
    %vm234 = vcmask 1048512
    %v235 = vsel %vm234, %v233, %v228
    %237 = vst [vmem:[#allocation2] sm:$0x1] %v235
    // Predicated region
    $region10: #{tpu_custom_call.1} parent=1 // pred_check
      _
    $region11: #{tpu_custom_call.1} parent=1 // pred_check_branch
      %239 = sbr.rel (0) target = $region13
    $region12: #{tpu_custom_call.1} parent=1 // pred_region
      %s241 = ssub.s32 16, 16
      %242 = vsyncadd [#allocation3], %s241
      %s244 = sshll.u32 [#allocation2], 4
      %s245 = int_to_ptr.vmem [resolvable:$true] %s244
      %247 = dma.vmem_to_hbm [thread:$0]  %s245, 16, %s2, [#allocation3]
    $region13: #{tpu_custom_call.1} parent=1 // pred_fallthru
      _
    // Predicated region
    $region14: #{tpu_custom_call.1} parent=1 // pred_check
      _
    $region15: #{tpu_custom_call.1} parent=1 // pred_check_branch
      %249 = sbr.rel (0) target = $region17
    $region16: #{tpu_custom_call.1} parent=1 // pred_region
      %250 = dma.done [#allocation3], 16
    $region17: #{tpu_custom_call.1} parent=1 // pred_fallthru
      _
    %251 = vsyncpa [#allocation3], 1

</llo_original>
